<compile_context>
chip_gen: v5e
topology: v5e:2x2
jax: 0.10.0
libtpu: 0.0.40
codegen_flags: <defaults>
</compile_context>

<pallas_src>
import functools

import jax
import jax.numpy as jnp
from jax import lax
from jax.experimental import pallas as pl
from jax.experimental.pallas import tpu as pltpu


def _kl_loss_kernel(zxs_ref, zys_ref, zxt_ref, zyt_ref, out_ref,
                    ysn_ref, ytn_ref, acc_ref, *, temperature, n_rows):
    i = pl.program_id(0)

    def normalize(x, scale):
        # Row-wise L2 normalization in f32 (per-norm clamp ~ torch eps=1e-8).
        xf = x.astype(jnp.float32)
        ss = jnp.sum(xf * xf, axis=-1, keepdims=True)
        inv = lax.rsqrt(jnp.maximum(ss, jnp.float32(1e-16))) * scale
        return xf * inv

    @pl.when(i == 0)
    def _init():
        acc_ref[0] = jnp.float32(0.0)
        acc_ref[1] = jnp.float32(0.0)
        # Normalize the resident "key" embeddings once; reused by every tile.
        ysn_ref[...] = normalize(zys_ref[...], 1.0).astype(ysn_ref.dtype)
        ytn_ref[...] = normalize(zyt_ref[...], 1.0).astype(ytn_ref.dtype)

    inv_temp = 1.0 / temperature
    # Normalized query tiles with the temperature scale folded in (keeps all
    # O(N^2) work down to one matmul + softmax pass).
    xs = normalize(zxs_ref[...], inv_temp).astype(ysn_ref.dtype)
    xt = normalize(zxt_ref[...], inv_temp).astype(ytn_ref.dtype)

    # Contract last dims of both operands -> (tm, N); no explicit transpose.
    dn = (((1,), (1,)), ((), ()))
    sim_s = lax.dot_general(xs, ysn_ref[...], dn,
                            preferred_element_type=jnp.float32)
    sim_t = lax.dot_general(xt, ytn_ref[...], dn,
                            preferred_element_type=jnp.float32)

    def log_softmax_and_probs(x):
        m = jnp.max(x, axis=1, keepdims=True)
        sh = x - m
        e = jnp.exp(sh)
        s = jnp.sum(e, axis=1, keepdims=True)
        log_p = sh - jnp.log(s)          # 1 log per row
        p = e * (1.0 / s)                # reuse exp; 1 divide per row
        return log_p, p

    log_s, p_s = log_softmax_and_probs(sim_s)
    log_t, p_t = log_softmax_and_probs(sim_t)

    # F.kl_div(log_p, q, 'batchmean') = sum(q * (log q - log_p)) / N
    diff = log_s - log_t
    acc_ref[0] = acc_ref[0] - jnp.sum(p_t * diff)   # loss_s partial
    acc_ref[1] = acc_ref[1] + jnp.sum(p_s * diff)   # loss_t partial

    @pl.when(i == pl.num_programs(0) - 1)
    def _finalize():
        inv_n = jnp.float32(1.0 / n_rows)
        out_ref[0] = acc_ref[0] * inv_n
        out_ref[1] = acc_ref[1] * inv_n


def _vmem_estimate(tm, n, d, itemsize):
    # resident keys + normalized copies + double-buffered query tiles
    # + ~12 live f32 (tm, n) temporaries (sim/exp/p/log_p/diff for s and t).
    return (4 * n * d + 4 * tm * d) * itemsize + 12 * tm * n * 4


def _pick_row_tile(n, d, itemsize):
    budget = 20 * 2**20   # keep working set under v7x 32-MiB scoped VMEM
    for tm in (512, 256, 128, 64, 32, 16, 8):
        if n % tm == 0 and _vmem_estimate(tm, n, d, itemsize) <= budget:
            return tm
    return n


def kl_loss(zxs, zys, zxt, zyt, temperature=0.1, row_tile=None):
    """Pallas equivalent of KLLoss.forward. Returns (loss_s, loss_t)."""
    assert zxs.shape == zys.shape == zxt.shape == zyt.shape
    assert zxs.ndim == 2
    n, d = zxs.shape
    dtype = zxs.dtype
    itemsize = jnp.dtype(dtype).itemsize

    if row_tile is None:
        row_tile = _pick_row_tile(n, d, itemsize)
    assert n % row_tile == 0, (n, row_tile)
    grid = (n // row_tile,)

    est = _vmem_estimate(row_tile, n, d, itemsize)
    vmem_limit = int(min(48 * 2**20, max(16 * 2**20, 2 * est)))

    kernel = functools.partial(_kl_loss_kernel,
                               temperature=float(temperature), n_rows=n)

    out = pl.pallas_call(
        kernel,
        out_shape=jax.ShapeDtypeStruct((2,), jnp.float32),
        grid_spec=pltpu.PrefetchScalarGridSpec(
            num_scalar_prefetch=0,
            grid=grid,
            in_specs=[
                pl.BlockSpec((row_tile, d), lambda i: (i, 0)),   # zxs tile
                pl.BlockSpec((n, d), lambda i: (0, 0)),          # zys resident
                pl.BlockSpec((row_tile, d), lambda i: (i, 0)),   # zxt tile
                pl.BlockSpec((n, d), lambda i: (0, 0)),          # zyt resident
            ],
            out_specs=pl.BlockSpec(memory_space=pltpu.SMEM),
            scratch_shapes=[
                pltpu.VMEM((n, d), dtype),          # normalized zys
                pltpu.VMEM((n, d), dtype),          # normalized zyt
                pltpu.SMEM((2,), jnp.float32),      # KL partial-sum accumulator
            ],
        ),
        compiler_params=pltpu.CompilerParams(
            dimension_semantics=("arbitrary",),     # row axis is the reduction axis
            vmem_limit_bytes=vmem_limit,
        ),
    )(zxs, zys, zxt, zyt)
    return out[0], out[1]


def _reference(zxs, zys, zxt, zyt, temperature=0.1):
    # Pure-JAX reference matching the PyTorch module.
    def cos(a, b):
        na = jnp.linalg.norm(a, axis=-1, keepdims=True)
        nb = jnp.linalg.norm(b, axis=-1, keepdims=True)
        return (a @ b.T) / jnp.maximum(na * nb.T, 1e-8)

    sim_s = jax.nn.softmax(cos(zxs, zys) / temperature, axis=1)
    sim_t = jax.nn.softmax(cos(zxt, zyt) / temperature, axis=1)
    n = zxs.shape[0]
    loss_s = jnp.sum(sim_t * (jnp.log(sim_t) - jnp.log(sim_s))) / n
    loss_t = jnp.sum(sim_s * (jnp.log(sim_s) - jnp.log(sim_t))) / n
    return loss_s, loss_t


if __name__ == "__main__":
    keys = jax.random.split(jax.random.PRNGKey(0), 8)

    # Case 1: small embedding batch (shapes implied by the module).
    N, D = 8, 32
    zxs = jax.random.normal(keys[0], (N, D), dtype=jnp.float32)
    zys = jax.random.normal(keys[1], (N, D), dtype=jnp.float32)
    zxt = jax.random.normal(keys[2], (N, D), dtype=jnp.float32)
    zyt = jax.random.normal(keys[3], (N, D), dtype=jnp.float32)

    loss_s, loss_t = kl_loss(zxs, zys, zxt, zyt, temperature=0.1)
    jax.block_until_ready((loss_s, loss_t))
    ref_s, ref_t = _reference(zxs, zys, zxt, zyt, temperature=0.1)
    assert jnp.allclose(loss_s, ref_s, atol=1e-4, rtol=1e-4), (loss_s, ref_s)
    assert jnp.allclose(loss_t, ref_t, atol=1e-4, rtol=1e-4), (loss_t, ref_t)

    # Case 2: exercise the multi-tile grid + accumulator path (grid = 4).
    N2, D2 = 32, 128
    a = jax.random.normal(keys[4], (N2, D2), dtype=jnp.float32)
    b = jax.random.normal(keys[5], (N2, D2), dtype=jnp.float32)
    c = jax.random.normal(keys[6], (N2, D2), dtype=jnp.float32)
    e = jax.random.normal(keys[7], (N2, D2), dtype=jnp.float32)

    l2s, l2t = kl_loss(a, b, c, e, temperature=0.1, row_tile=8)
    jax.block_until_ready((l2s, l2t))
    r2s, r2t = _reference(a, b, c, e, temperature=0.1)
    assert jnp.allclose(l2s, r2s, atol=1e-4, rtol=1e-4), (l2s, r2s)
    assert jnp.allclose(l2t, r2t, atol=1e-4, rtol=1e-4), (l2t, r2t)

    print("KERNEL_OK")
</pallas_src>

<mosaic_0001>
module attributes {stable_mosaic.version = 11 : i64} {
  func.func @_kl_loss_kernel(%arg0: i32, %arg1: memref<8x32xf32, #tpu.memory_space<vmem>>, %arg2: memref<8x32xf32, #tpu.memory_space<vmem>>, %arg3: memref<8x32xf32, #tpu.memory_space<vmem>>, %arg4: memref<8x32xf32, #tpu.memory_space<vmem>>, %arg5: memref<2xf32, #tpu.memory_space<smem>>, %arg6: memref<8x32xf32, #tpu.memory_space<vmem>>, %arg7: memref<8x32xf32, #tpu.memory_space<vmem>>, %arg8: memref<2xf32, #tpu.memory_space<smem>>) attributes {dimension_semantics = [#tpu.dimension_semantics<arbitrary>], iteration_bounds = array<i64: 1>, scalar_prefetch = 0 : i64, scratch_operands = 3 : i64, tpu.core_type = #tpu.core_type<tc>, window_params = [{transform_indices = @transform_0, window_bounds = array<i64: 8, 32>}, {pipeline_mode = #tpu.pipeline_mode<synchronous>, transform_indices = @transform_1, window_bounds = array<i64: 8, 32>}, {transform_indices = @transform_2, window_bounds = array<i64: 8, 32>}, {pipeline_mode = #tpu.pipeline_mode<synchronous>, transform_indices = @transform_3, window_bounds = array<i64: 8, 32>}, {transform_indices = @transform_4, window_bounds = array<i64: 2>}]} {
    %c0_i32 = arith.constant 0 : i32
    %0 = arith.cmpi eq, %arg0, %c0_i32 : i32
    %1 = arith.extui %0 : i1 to i32
    %c0_i32_0 = arith.constant 0 : i32
    %2 = arith.cmpi ne, %1, %c0_i32_0 : i32
    scf.if %2 {
      %cst_28 = arith.constant 0.000000e+00 : f32
      %c0_29 = arith.constant 0 : index
      %77 = memref.load %arg8[%c0_29] : memref<2xf32, #tpu.memory_space<smem>>
      memref.store %cst_28, %arg8[%c0_29] : memref<2xf32, #tpu.memory_space<smem>>
      %cst_30 = arith.constant 0.000000e+00 : f32
      %c1_31 = arith.constant 1 : index
      %78 = memref.load %arg8[%c1_31] : memref<2xf32, #tpu.memory_space<smem>>
      memref.store %cst_30, %arg8[%c1_31] : memref<2xf32, #tpu.memory_space<smem>>
      %c0_32 = arith.constant 0 : index
      %c0_33 = arith.constant 0 : index
      %79 = vector.load %arg2[%c0_32, %c0_33] : memref<8x32xf32, #tpu.memory_space<vmem>>, vector<8x32xf32>
      %80 = arith.mulf %79, %79 : vector<8x32xf32>
      %cst_34 = arith.constant dense<0.000000e+00> : vector<8xf32>
      %81 = vector.multi_reduction <add>, %80, %cst_34 [1] : vector<8x32xf32> to vector<8xf32>
      %82 = vector.shape_cast %81 : vector<8xf32> to vector<8x1xf32>
      %cst_35 = arith.constant 1.000000e-16 : f32
      %83 = vector.broadcast %cst_35 : f32 to vector<8x1xf32>
      %84 = arith.maximumf %82, %83 : vector<8x1xf32>
      %85 = math.rsqrt %84 : vector<8x1xf32>
      %cst_36 = arith.constant 1.000000e+00 : f32
      %86 = vector.broadcast %cst_36 : f32 to vector<8x1xf32>
      %87 = arith.mulf %85, %86 : vector<8x1xf32>
      %88 = vector.broadcast %87 : vector<8x1xf32> to vector<8x32xf32>
      %89 = arith.mulf %79, %88 : vector<8x32xf32>
      %c0_37 = arith.constant 0 : index
      %c0_38 = arith.constant 0 : index
      %90 = vector.load %arg6[%c0_37, %c0_38] : memref<8x32xf32, #tpu.memory_space<vmem>>, vector<8x32xf32>
      tpu.vector_store %arg6[%c0_37, %c0_38], %89 {strides = array<i32>} : memref<8x32xf32, #tpu.memory_space<vmem>>, vector<8x32xf32>,
      %c0_39 = arith.constant 0 : index
      %c0_40 = arith.constant 0 : index
      %91 = vector.load %arg4[%c0_39, %c0_40] : memref<8x32xf32, #tpu.memory_space<vmem>>, vector<8x32xf32>
      %92 = arith.mulf %91, %91 : vector<8x32xf32>
      %cst_41 = arith.constant dense<0.000000e+00> : vector<8xf32>
      %93 = vector.multi_reduction <add>, %92, %cst_41 [1] : vector<8x32xf32> to vector<8xf32>
      %94 = vector.shape_cast %93 : vector<8xf32> to vector<8x1xf32>
      %cst_42 = arith.constant 1.000000e-16 : f32
      %95 = vector.broadcast %cst_42 : f32 to vector<8x1xf32>
      %96 = arith.maximumf %94, %95 : vector<8x1xf32>
      %97 = math.rsqrt %96 : vector<8x1xf32>
      %cst_43 = arith.constant 1.000000e+00 : f32
      %98 = vector.broadcast %cst_43 : f32 to vector<8x1xf32>
      %99 = arith.mulf %97, %98 : vector<8x1xf32>
      %100 = vector.broadcast %99 : vector<8x1xf32> to vector<8x32xf32>
      %101 = arith.mulf %91, %100 : vector<8x32xf32>
      %c0_44 = arith.constant 0 : index
      %c0_45 = arith.constant 0 : index
      %102 = vector.load %arg7[%c0_44, %c0_45] : memref<8x32xf32, #tpu.memory_space<vmem>>, vector<8x32xf32>
      tpu.vector_store %arg7[%c0_44, %c0_45], %101 {strides = array<i32>} : memref<8x32xf32, #tpu.memory_space<vmem>>, vector<8x32xf32>,
    } else {
    }
    %c0 = arith.constant 0 : index
    %c0_1 = arith.constant 0 : index
    %3 = vector.load %arg1[%c0, %c0_1] : memref<8x32xf32, #tpu.memory_space<vmem>>, vector<8x32xf32>
    %4 = arith.mulf %3, %3 : vector<8x32xf32>
    %cst = arith.constant dense<0.000000e+00> : vector<8xf32>
    %5 = vector.multi_reduction <add>, %4, %cst [1] : vector<8x32xf32> to vector<8xf32>
    %6 = vector.shape_cast %5 : vector<8xf32> to vector<8x1xf32>
    %cst_2 = arith.constant 1.000000e-16 : f32
    %7 = vector.broadcast %cst_2 : f32 to vector<8x1xf32>
    %8 = arith.maximumf %6, %7 : vector<8x1xf32>
    %9 = math.rsqrt %8 : vector<8x1xf32>
    %cst_3 = arith.constant 1.000000e+01 : f32
    %10 = vector.broadcast %cst_3 : f32 to vector<8x1xf32>
    %11 = arith.mulf %9, %10 : vector<8x1xf32>
    %12 = vector.broadcast %11 : vector<8x1xf32> to vector<8x32xf32>
    %13 = arith.mulf %3, %12 : vector<8x32xf32>
    %c0_4 = arith.constant 0 : index
    %c0_5 = arith.constant 0 : index
    %14 = vector.load %arg3[%c0_4, %c0_5] : memref<8x32xf32, #tpu.memory_space<vmem>>, vector<8x32xf32>
    %15 = arith.mulf %14, %14 : vector<8x32xf32>
    %cst_6 = arith.constant dense<0.000000e+00> : vector<8xf32>
    %16 = vector.multi_reduction <add>, %15, %cst_6 [1] : vector<8x32xf32> to vector<8xf32>
    %17 = vector.shape_cast %16 : vector<8xf32> to vector<8x1xf32>
    %cst_7 = arith.constant 1.000000e-16 : f32
    %18 = vector.broadcast %cst_7 : f32 to vector<8x1xf32>
    %19 = arith.maximumf %17, %18 : vector<8x1xf32>
    %20 = math.rsqrt %19 : vector<8x1xf32>
    %cst_8 = arith.constant 1.000000e+01 : f32
    %21 = vector.broadcast %cst_8 : f32 to vector<8x1xf32>
    %22 = arith.mulf %20, %21 : vector<8x1xf32>
    %23 = vector.broadcast %22 : vector<8x1xf32> to vector<8x32xf32>
    %24 = arith.mulf %14, %23 : vector<8x32xf32>
    %c0_9 = arith.constant 0 : index
    %c0_10 = arith.constant 0 : index
    %25 = vector.load %arg6[%c0_9, %c0_10] : memref<8x32xf32, #tpu.memory_space<vmem>>, vector<8x32xf32>
    %cst_11 = arith.constant dense<0.000000e+00> : vector<8x8xf32>
    %26 = tpu.matmul %13, %25, %cst_11 {dimension_numbers = #tpu.dot_dimension_numbers<[1], [1], [0], [0], [0, 0, 1, 0], [], []>} : vector<8x32xf32>, vector<8x32xf32>, vector<8x8xf32> -> vector<8x8xf32>
    %c0_12 = arith.constant 0 : index
    %c0_13 = arith.constant 0 : index
    %27 = vector.load %arg7[%c0_12, %c0_13] : memref<8x32xf32, #tpu.memory_space<vmem>>, vector<8x32xf32>
    %cst_14 = arith.constant dense<0.000000e+00> : vector<8x8xf32>
    %28 = tpu.matmul %24, %27, %cst_14 {dimension_numbers = #tpu.dot_dimension_numbers<[1], [1], [0], [0], [0, 0, 1, 0], [], []>} : vector<8x32xf32>, vector<8x32xf32>, vector<8x8xf32> -> vector<8x8xf32>
    %cst_15 = arith.constant dense<0xFF800000> : vector<8xf32>
    %29 = vector.multi_reduction <maximumf>, %26, %cst_15 [1] : vector<8x8xf32> to vector<8xf32>
    %30 = vector.shape_cast %29 : vector<8xf32> to vector<8x1xf32>
    %31 = vector.broadcast %30 : vector<8x1xf32> to vector<8x8xf32>
    %32 = arith.subf %26, %31 : vector<8x8xf32>
    %33 = math.exp %32 : vector<8x8xf32>
    %cst_16 = arith.constant dense<0.000000e+00> : vector<8xf32>
    %34 = vector.multi_reduction <add>, %33, %cst_16 [1] : vector<8x8xf32> to vector<8xf32>
    %35 = vector.shape_cast %34 : vector<8xf32> to vector<8x1xf32>
    %36 = math.log %35 : vector<8x1xf32>
    %37 = vector.broadcast %36 : vector<8x1xf32> to vector<8x8xf32>
    %38 = arith.subf %32, %37 : vector<8x8xf32>
    %cst_17 = arith.constant 1.000000e+00 : f32
    %39 = vector.broadcast %cst_17 : f32 to vector<8x1xf32>
    %40 = arith.divf %39, %35 : vector<8x1xf32>
    %41 = vector.broadcast %40 : vector<8x1xf32> to vector<8x8xf32>
    %42 = arith.mulf %33, %41 : vector<8x8xf32>
    %cst_18 = arith.constant dense<0xFF800000> : vector<8xf32>
    %43 = vector.multi_reduction <maximumf>, %28, %cst_18 [1] : vector<8x8xf32> to vector<8xf32>
    %44 = vector.shape_cast %43 : vector<8xf32> to vector<8x1xf32>
    %45 = vector.broadcast %44 : vector<8x1xf32> to vector<8x8xf32>
    %46 = arith.subf %28, %45 : vector<8x8xf32>
    %47 = math.exp %46 : vector<8x8xf32>
    %cst_19 = arith.constant dense<0.000000e+00> : vector<8xf32>
    %48 = vector.multi_reduction <add>, %47, %cst_19 [1] : vector<8x8xf32> to vector<8xf32>
    %49 = vector.shape_cast %48 : vector<8xf32> to vector<8x1xf32>
    %50 = math.log %49 : vector<8x1xf32>
    %51 = vector.broadcast %50 : vector<8x1xf32> to vector<8x8xf32>
    %52 = arith.subf %46, %51 : vector<8x8xf32>
    %cst_20 = arith.constant 1.000000e+00 : f32
    %53 = vector.broadcast %cst_20 : f32 to vector<8x1xf32>
    %54 = arith.divf %53, %49 : vector<8x1xf32>
    %55 = vector.broadcast %54 : vector<8x1xf32> to vector<8x8xf32>
    %56 = arith.mulf %47, %55 : vector<8x8xf32>
    %57 = arith.subf %38, %52 : vector<8x8xf32>
    %c0_21 = arith.constant 0 : index
    %58 = memref.load %arg8[%c0_21] : memref<2xf32, #tpu.memory_space<smem>>
    %59 = arith.mulf %56, %57 : vector<8x8xf32>
    %60 = vector.shape_cast %59 : vector<8x8xf32> to vector<1x8x8xf32>
    %cst_22 = arith.constant dense<0.000000e+00> : vector<1xf32>
    %61 = vector.multi_reduction <add>, %60, %cst_22 [1, 2] : vector<1x8x8xf32> to vector<1xf32>
    %62 = vector.shape_cast %61 : vector<1xf32> to vector<1x1x1xf32>
    %63 = vector.extract %62[0, 0, 0] : f32 from vector<1x1x1xf32>
    %64 = arith.subf %58, %63 : f32
    %c0_23 = arith.constant 0 : index
    %65 = memref.load %arg8[%c0_23] : memref<2xf32, #tpu.memory_space<smem>>
    memref.store %64, %arg8[%c0_23] : memref<2xf32, #tpu.memory_space<smem>>
    %c1 = arith.constant 1 : index
    %66 = memref.load %arg8[%c1] : memref<2xf32, #tpu.memory_space<smem>>
    %67 = arith.mulf %42, %57 : vector<8x8xf32>
    %68 = vector.shape_cast %67 : vector<8x8xf32> to vector<1x8x8xf32>
    %cst_24 = arith.constant dense<0.000000e+00> : vector<1xf32>
    %69 = vector.multi_reduction <add>, %68, %cst_24 [1, 2] : vector<1x8x8xf32> to vector<1xf32>
    %70 = vector.shape_cast %69 : vector<1xf32> to vector<1x1x1xf32>
    %71 = vector.extract %70[0, 0, 0] : f32 from vector<1x1x1xf32>
    %72 = arith.addf %66, %71 : f32
    %c1_25 = arith.constant 1 : index
    %73 = memref.load %arg8[%c1_25] : memref<2xf32, #tpu.memory_space<smem>>
    memref.store %72, %arg8[%c1_25] : memref<2xf32, #tpu.memory_space<smem>>
    %c0_i32_26 = arith.constant 0 : i32
    %74 = arith.cmpi eq, %arg0, %c0_i32_26 : i32
    %75 = arith.extui %74 : i1 to i32
    %c0_i32_27 = arith.constant 0 : i32
    %76 = arith.cmpi ne, %75, %c0_i32_27 : i32
    scf.if %76 {
      %c0_28 = arith.constant 0 : index
      %77 = memref.load %arg8[%c0_28] : memref<2xf32, #tpu.memory_space<smem>>
      %cst_29 = arith.constant 1.250000e-01 : f32
      %78 = arith.mulf %77, %cst_29 : f32
      %c0_30 = arith.constant 0 : index
      %79 = memref.load %arg5[%c0_30] : memref<2xf32, #tpu.memory_space<smem>>
      memref.store %78, %arg5[%c0_30] : memref<2xf32, #tpu.memory_space<smem>>
      %c1_31 = arith.constant 1 : index
      %80 = memref.load %arg8[%c1_31] : memref<2xf32, #tpu.memory_space<smem>>
      %cst_32 = arith.constant 1.250000e-01 : f32
      %81 = arith.mulf %80, %cst_32 : f32
      %c1_33 = arith.constant 1 : index
      %82 = memref.load %arg5[%c1_33] : memref<2xf32, #tpu.memory_space<smem>>
      memref.store %81, %arg5[%c1_33] : memref<2xf32, #tpu.memory_space<smem>>
    } else {
    }
    return
  }
  func.func @transform_0(%arg0: i32) -> (i32, i32) {
    %c0_i32 = arith.constant 0 : i32
    %c0_i32_0 = arith.constant 0 : i32
    return %arg0, %c0_i32 : i32, i32
  }
  func.func @transform_1(%arg0: i32) -> (i32, i32) {
    %c0_i32 = arith.constant 0 : i32
    %c0_i32_0 = arith.constant 0 : i32
    %c0_i32_1 = arith.constant 0 : i32
    return %c0_i32, %c0_i32_0 : i32, i32
  }
  func.func @transform_2(%arg0: i32) -> (i32, i32) {
    %c0_i32 = arith.constant 0 : i32
    %c0_i32_0 = arith.constant 0 : i32
    return %arg0, %c0_i32 : i32, i32
  }
  func.func @transform_3(%arg0: i32) -> (i32, i32) {
    %c0_i32 = arith.constant 0 : i32
    %c0_i32_0 = arith.constant 0 : i32
    %c0_i32_1 = arith.constant 0 : i32
    return %c0_i32, %c0_i32_0 : i32, i32
  }
  func.func @transform_4(%arg0: i32) -> i32 {
    %c0_i32 = arith.constant 0 : i32
    %c0_i32_0 = arith.constant 0 : i32
    return %c0_i32 : i32
  }
}

</mosaic_0001>

<llo_original>
// kernel: tpu_custom_call.1
$region0: #{tpu_custom_call.1}
  #allocation0 [shape = 'u32[]', space=smem, size = 0x4, offset = 0x4, fixed_abs, tag = 'smem constant byte address 0x4 - core index']
  #allocation1 [shape = 'u32[72,128]{1,0:T(1,128)}', space=vmem, size = 0x9000, scoped, tag = 'internal scratch']
  #allocation2 [shape = 'f32[8,32]{1,0:T(8,128)}', space=vmem, size = 0x1000, scoped, tag = 'scratch operand']
  #allocation3 [shape = 'f32[8,32]{1,0:T(8,128)}', space=vmem, size = 0x1000, scoped, tag = 'scratch operand']
  #allocation4 [shape = 'f32[2]{0:T(128)}', space=smem, size = 0x200, scoped, tag = 'scratch operand']
  %s0 = inlined_call_operand.hbm [shape: f32[8,32], index: 0, kind: input, shape index: {}]
  %s1 = inlined_call_operand.hbm [shape: f32[8,32], index: 1, kind: input, shape index: {}]
  %s2 = inlined_call_operand.hbm [shape: f32[8,32], index: 2, kind: input, shape index: {}]
  %s3 = inlined_call_operand.hbm [shape: f32[8,32], index: 3, kind: input, shape index: {}]
  %s4 = inlined_call_operand.hbm [shape: f32[2], index: 4, kind: output, shape index: {}]
  %s5 = sld [smem:[#allocation0]]
  $region50: #{tpu_custom_call.1} parent=0
    _
  %s7 = ssub.s32 1, %s5
  %s8 = scalar_select 0, %s7, %s5
  $region1: #{tpu_custom_call.1} parent=0
    #allocation5 [shape = 'u8[4096]{0}', space=vmem, size = 0x1000, scoped, tag = 'input window, operand 0, single buffered']
    #allocation6 [shape = 's32[1]{0}', space=sflag, size = 0x4, scoped, tag = 'scoped memory for tpu_custom_call.1']
    #allocation7 [shape = 's32[1]{0}', space=sflag, size = 0x4, scoped, tag = 'scoped memory for tpu_custom_call.1']
    #allocation8 [shape = 'u8[4096]{0}', space=vmem, size = 0x1000, scoped, tag = 'input window, operand 1, single buffered']
    #allocation9 [shape = 's32[1]{0}', space=sflag, size = 0x4, scoped, tag = 'scoped memory for tpu_custom_call.1']
    #allocation10 [shape = 'u8[4096]{0}', space=vmem, size = 0x1000, scoped, tag = 'input window, operand 2, single buffered']
    #allocation11 [shape = 'u8[4096]{0}', space=vmem, size = 0x1000, scoped, tag = 'input window, operand 3, single buffered']
    #allocation12 [shape = 's32[1]{0}', space=sflag, size = 0x4, scoped, tag = 'scoped memory for tpu_custom_call.1']
    #allocation13 [shape = 'u8[512]{0}', space=smem, size = 0x200, scoped, tag = 'output window, operand 0, single buffered']
    %9 = vsyncpa [#allocation6], 0
    %10 = vsyncpa [#allocation9], 0
    %11 = vsyncpa [#allocation12], 0
    %12 = vsyncpa [#allocation7], 0
    // Predicated region
    $region2: #{tpu_custom_call.1} parent=1 // pred_check
      _
    $region3: #{tpu_custom_call.1} parent=1 // pred_check_branch
      %14 = sbr.rel (0) target = $region5
    $region4: #{tpu_custom_call.1} parent=1 // pred_region
      %16 = vsyncadd [#allocation6], 0
      %s18 = sshll.u32 %s0, 4
      %s19 = int_to_ptr.hbm [resolvable:$true] %s18
      %s20 = sshll.u32 [#allocation5], 4
      %s21 = int_to_ptr.vmem [resolvable:$true] %s20
      %23 = dma.hbm_to_vmem [thread:$0]  %s19, 128, %s21, [#allocation6]
    $region5: #{tpu_custom_call.1} parent=1 // pred_fallthru
      _
    // Predicated region
    $region6: #{tpu_custom_call.1} parent=1 // pred_check
      _
    $region7: #{tpu_custom_call.1} parent=1 // pred_check_branch
      %25 = sbr.rel (0) target = $region9
    $region8: #{tpu_custom_call.1} parent=1 // pred_region
      %27 = vsyncadd [#allocation9], 0
      %s29 = sshll.u32 %s1, 4
      %s30 = int_to_ptr.hbm [resolvable:$true] %s29
      %s31 = sshll.u32 [#allocation8], 4
      %s32 = int_to_ptr.vmem [resolvable:$true] %s31
      %34 = dma.hbm_to_vmem [thread:$0]  %s30, 128, %s32, [#allocation9]
    $region9: #{tpu_custom_call.1} parent=1 // pred_fallthru
      _
    // Predicated region
    $region10: #{tpu_custom_call.1} parent=1 // pred_check
      _
    $region11: #{tpu_custom_call.1} parent=1 // pred_check_branch
      %36 = sbr.rel (0) target = $region13
    $region12: #{tpu_custom_call.1} parent=1 // pred_region
      %38 = vsyncadd [#allocation9], 0
      %s40 = sshll.u32 %s2, 4
      %s41 = int_to_ptr.hbm [resolvable:$true] %s40
      %s42 = sshll.u32 [#allocation10], 4
      %s43 = int_to_ptr.vmem [resolvable:$true] %s42
      %45 = dma.hbm_to_vmem [thread:$0]  %s41, 128, %s43, [#allocation9]
    $region13: #{tpu_custom_call.1} parent=1 // pred_fallthru
      _
    // Predicated region
    $region14: #{tpu_custom_call.1} parent=1 // pred_check
      _
    $region15: #{tpu_custom_call.1} parent=1 // pred_check_branch
      %47 = sbr.rel (0) target = $region17
    $region16: #{tpu_custom_call.1} parent=1 // pred_region
      %49 = vsyncadd [#allocation12], 0
      %s51 = sshll.u32 %s3, 4
      %s52 = int_to_ptr.hbm [resolvable:$true] %s51
      %s53 = sshll.u32 [#allocation11], 4
      %s54 = int_to_ptr.vmem [resolvable:$true] %s53
      %56 = dma.hbm_to_vmem [thread:$0]  %s52, 128, %s54, [#allocation12]
    $region17: #{tpu_custom_call.1} parent=1 // pred_fallthru
      _
    // Predicated region
    $region18: #{tpu_custom_call.1} parent=1 // pred_check
      _
    $region19: #{tpu_custom_call.1} parent=1 // pred_check_branch
      %58 = sbr.rel (0) target = $region21
    $region20: #{tpu_custom_call.1} parent=1 // pred_region
      %60 = dma.done [#allocation6], 128
    $region21: #{tpu_custom_call.1} parent=1 // pred_fallthru
      _
    // Predicated region
    $region22: #{tpu_custom_call.1} parent=1 // pred_check
      _
    $region23: #{tpu_custom_call.1} parent=1 // pred_check_branch
      %62 = sbr.rel (0) target = $region25
    $region24: #{tpu_custom_call.1} parent=1 // pred_region
      %64 = dma.done [#allocation9], 128
    $region25: #{tpu_custom_call.1} parent=1 // pred_fallthru
      _
    // Predicated region
    $region26: #{tpu_custom_call.1} parent=1 // pred_check
      _
    $region27: #{tpu_custom_call.1} parent=1 // pred_check_branch
      %66 = sbr.rel (0) target = $region29
    $region28: #{tpu_custom_call.1} parent=1 // pred_region
      %68 = dma.done [#allocation9], 128
    $region29: #{tpu_custom_call.1} parent=1 // pred_fallthru
      _
    // Predicated region
    $region30: #{tpu_custom_call.1} parent=1 // pred_check
      _
    $region31: #{tpu_custom_call.1} parent=1 // pred_check_branch
      %70 = sbr.rel (0) target = $region33
    $region32: #{tpu_custom_call.1} parent=1 // pred_region
      %72 = dma.done [#allocation12], 128
    $region33: #{tpu_custom_call.1} parent=1 // pred_fallthru
      _
    %p73 = scmp.eq.s32.totalorder 0, 0
    // Predicated region
    $region34: #{tpu_custom_call.1} parent=1 // pred_check
      %p74 = pneg %p73
    $region35: #{tpu_custom_call.1} parent=1 // pred_check_branch
      %76 = sbr.rel (%p74) target = $region37
    $region36: #{tpu_custom_call.1} parent=1 // pred_region
      %s77 = scalar_lea.smem [#allocation4], 0
      %78 = sst [smem:[%s77]] 0.0
      %s79 = scalar_lea.smem [#allocation4], 1
      %80 = sst [smem:[%s79]] 0.0
      %v81 = vld [vmem:[#allocation8] sm:$0xff]
      %v82 = vmul.f32 %v81, %v81
      %vm83 = vcmask 261120
      %v84 = vsel %vm83, %v82, 0.0
      %85 = vadd.xlane.f32.xlu0 %v84
      %v86 = vpop.xlane.xlu0 %85
      %v87 = vmax.f32 %v86, 1e-16
      %v88 = vrsqrt.pop %v87
      %v89 = vmul.f32 %v88, %v87
      %v90 = vmul.f32 %v89, %v88
      %v91 = vmul.f32 0.5, %v90
      %v92 = vsub.f32 1.5, %v91
      %v93 = vmul.f32 %v88, %v92
      %vm94 = vweird.f32 %v87
      %vm95 = vweird.f32 %v88
      %vm96 = vmor %vm94, %vm95
      %v97 = vsel %vm96, %v88, %v93
      %v98 = vmul.f32 %v81, %v97
      %99 = vst.msk [vmem:[#allocation2] sm:$0xff] %vm83, %v98
      %v100 = vld [vmem:[#allocation11] sm:$0xff]
      %v101 = vmul.f32 %v100, %v100
      %v102 = vsel %vm83, %v101, 0.0
      %103 = vadd.xlane.f32.xlu0 %v102
      %v104 = vpop.xlane.xlu0 %103
      %v105 = vmax.f32 %v104, 1e-16
      %v106 = vrsqrt.pop %v105
      %v107 = vmul.f32 %v106, %v105
      %v108 = vmul.f32 %v107, %v106
      %v109 = vmul.f32 0.5, %v108
      %v110 = vsub.f32 1.5, %v109
      %v111 = vmul.f32 %v106, %v110
      %vm112 = vweird.f32 %v105
      %vm113 = vweird.f32 %v106
      %vm114 = vmor %vm112, %vm113
      %v115 = vsel %vm114, %v106, %v111
      %v116 = vmul.f32 %v100, %v115
      %117 = vst.msk [vmem:[#allocation3] sm:$0xff] %vm83, %v116
    $region37: #{tpu_custom_call.1} parent=1 // pred_fallthru
      _
    %v118 = vld [vmem:[#allocation5] sm:$0xff]
    %v119 = vmul.f32 %v118, %v118
    %vm120 = vcmask 261120
    %v121 = vsel %vm120, %v119, 0.0
    %122 = vadd.xlane.f32.xlu0 %v121
    %v123 = vpop.xlane.xlu0 %122
    %v124 = vmax.f32 %v123, 1e-16
    %v125 = vrsqrt.pop %v124
    %v126 = vmul.f32 %v125, %v124
    %v127 = vmul.f32 %v126, %v125
    %v128 = vmul.f32 0.5, %v127
    %v129 = vsub.f32 1.5, %v128
    %v130 = vmul.f32 %v125, %v129
    %vm131 = vweird.f32 %v124
    %vm132 = vweird.f32 %v125
    %vm133 = vmor %vm131, %vm132
    %v134 = vsel %vm133, %v125, %v130
    %v135 = vmul.f32 %v134, 10.0
    %v136 = vmul.f32 %v118, %v135
    %v137 = vld [vmem:[#allocation10] sm:$0xff]
    %v138 = vmul.f32 %v137, %v137
    %v139 = vsel %vm120, %v138, 0.0
    %140 = vadd.xlane.f32.xlu0 %v139
    %v141 = vpop.xlane.xlu0 %140
    %v142 = vmax.f32 %v141, 1e-16
    %v143 = vrsqrt.pop %v142
    %v144 = vmul.f32 %v143, %v142
    %v145 = vmul.f32 %v144, %v143
    %v146 = vmul.f32 0.5, %v145
    %v147 = vsub.f32 1.5, %v146
    %v148 = vmul.f32 %v143, %v147
    %vm149 = vweird.f32 %v142
    %vm150 = vweird.f32 %v143
    %vm151 = vmor %vm149, %vm150
    %v152 = vsel %vm151, %v143, %v148
    %v153 = vmul.f32 %v152, 10.0
    %v154 = vmul.f32 %v137, %v153
    %v155 = vld [vmem:[#allocation2] sm:$0xff]
    %v157 = vsel %vm120, %v136, 0
    %v160 = vsel %vm120, %v155, 0
    %162 = vmatpush.xpose.msra.mxu0 0.0
    %163 = vmatpush.xpose.msra.mxu0 0.0
    %164 = vmatpush.xpose.msra.mxu0 0.0
    %165 = vmatpush.xpose.msra.mxu0 0.0
    %166 = vmatpush.xpose.msra.mxu0 0.0
    %167 = vmatpush.xpose.msra.mxu0 0.0
    %168 = vmatpush.xpose.msra.mxu0 0.0
    %169 = vmatpush.xpose.msra.mxu0 0.0
    %170 = vmatpush.xpose.msra.mxu0 0.0
    %171 = vmatpush.xpose.msra.mxu0 0.0
    %172 = vmatpush.xpose.msra.mxu0 0.0
    %173 = vmatpush.xpose.msra.mxu0 0.0
    %174 = vmatpush.xpose.msra.mxu0 0.0
    %175 = vmatpush.xpose.msra.mxu0 0.0
    %176 = vmatpush.xpose.msra.mxu0 0.0
    %177 = vmatpush.xpose.msra.mxu0 %v160
    %178 = vmatmul.f32.gmra.mxu0 %v157
    %v179 = vpop.f32.mrf.mxu0
    %v180 = vadd.f32 0.0, %v179
    %181 = vdwg.mxu0
    %v182 = vld [vmem:[#allocation3] sm:$0xff]
    %v184 = vsel %vm120, %v154, 0
    %v187 = vsel %vm120, %v182, 0
    %189 = vmatpush.xpose.msra.mxu0 0.0
    %190 = vmatpush.xpose.msra.mxu0 0.0
    %191 = vmatpush.xpose.msra.mxu0 0.0
    %192 = vmatpush.xpose.msra.mxu0 0.0
    %193 = vmatpush.xpose.msra.mxu0 0.0
    %194 = vmatpush.xpose.msra.mxu0 0.0
    %195 = vmatpush.xpose.msra.mxu0 0.0
    %196 = vmatpush.xpose.msra.mxu0 0.0
    %197 = vmatpush.xpose.msra.mxu0 0.0
    %198 = vmatpush.xpose.msra.mxu0 0.0
    %199 = vmatpush.xpose.msra.mxu0 0.0
    %200 = vmatpush.xpose.msra.mxu0 0.0
    %201 = vmatpush.xpose.msra.mxu0 0.0
    %202 = vmatpush.xpose.msra.mxu0 0.0
    %203 = vmatpush.xpose.msra.mxu0 0.0
    %204 = vmatpush.xpose.msra.mxu0 %v187
    %205 = vmatmul.f32.gmra.mxu0 %v184
    %v206 = vpop.f32.mrf.mxu0
    %v207 = vadd.f32 0.0, %v206
    %208 = vdwg.mxu0
    %vm209 = vcmask 64512
    %v210 = vsel %vm209, %v180, -inf
    %211 = vmax.xlane.f32.xlu0 %v210
    %v212 = vpop.xlane.xlu0 %211
    %v213 = vsub.f32 %v180, %v212
    %v214 = vmul.f32 %v213, 1.442695
    %v215 = vpow.pop %v214
    %v216 = vsel %vm209, %v215, 0.0
    %217 = vadd.xlane.f32.xlu0 %v216
    %v218 = vpop.xlane.xlu0 %217
    %v219 = vlog2.pop %v218
    %v220 = vmul.f32 %v219, 0.6931472
    %v221 = vsub.f32 %v213, %v220
    %v222 = vrcp.pop %v218
    %v223 = vmul.f32 %v218, %v222
    %v224 = vsub.f32 1.0, %v223
    %v225 = vmul.f32 %v222, %v224
    %v226 = vadd.f32 %v222, %v225
    %vm227 = vweird.f32 %v218
    %vm228 = vweird.f32 %v222
    %vm229 = vmor %vm227, %vm228
    %v230 = vsel %vm229, %v222, %v226
    %v231 = vand.u32 2147483647, %v218
    %vm232 = vcmp.eq.f32.partialorder %v231, 8.507059e+37
    %v233 = vand.u32 %v218, 2147483648
    %v234 = vor.u32 1.1754944e-38, %v233
    %v235 = vsel %vm232, %v234, %v230
    %v236 = vmul.f32 1.0, %v235
    %v237 = vmul.f32 %v215, %v236
    %v238 = vsel %vm209, %v207, -inf
    %239 = vmax.xlane.f32.xlu0 %v238
    %v240 = vpop.xlane.xlu0 %239
    %v241 = vsub.f32 %v207, %v240
    %v242 = vmul.f32 %v241, 1.442695
    %v243 = vpow.pop %v242
    %v244 = vsel %vm209, %v243, 0.0
    %245 = vadd.xlane.f32.xlu0 %v244
    %v246 = vpop.xlane.xlu0 %245
    %v247 = vlog2.pop %v246
    %v248 = vmul.f32 %v247, 0.6931472
    %v249 = vsub.f32 %v241, %v248
    %v250 = vrcp.pop %v246
    %v251 = vmul.f32 %v246, %v250
    %v252 = vsub.f32 1.0, %v251
    %v253 = vmul.f32 %v250, %v252
    %v254 = vadd.f32 %v250, %v253
    %vm255 = vweird.f32 %v246
    %vm256 = vweird.f32 %v250
    %vm257 = vmor %vm255, %vm256
    %v258 = vsel %vm257, %v250, %v254
    %v259 = vand.u32 2147483647, %v246
    %vm260 = vcmp.eq.f32.partialorder %v259, 8.507059e+37
    %v261 = vand.u32 %v246, 2147483648
    %v262 = vor.u32 1.1754944e-38, %v261
    %v263 = vsel %vm260, %v262, %v258
    %v264 = vmul.f32 1.0, %v263
    %v265 = vmul.f32 %v243, %v264
    %v266 = vsub.f32 %v221, %v249
    %s267 = sld [smem:[#allocation4]]
    %v268 = vmul.f32 %v265, %v266
    %v269 = vsel %vm209, %v268, 0.0
    %270 = vadd.xlane.f32.xlu0 %v269
    %v271 = vpop.xlane.xlu0 %270
    %v272 = vrot.slane %v271, 4
    %v273 = vadd.f32 %v271, %v272
    %v274 = vrot.slane %v273, 2
    %v275 = vadd.f32 %v273, %v274
    %v276 = vrot.slane %v275, 1
    %v277 = vadd.f32 %v275, %v276
    %s278 = vtos %v277
    %s279 = ssub.f32 %s267, %s278
    %s280 = scalar_lea.smem [#allocation4], 0
    %281 = sst [smem:[%s280]] %s279
    %s282 = sld [smem:[#allocation4 + $0x1]]
    %v283 = vmul.f32 %v237, %v266
    %v284 = vsel %vm209, %v283, 0.0
    %285 = vadd.xlane.f32.xlu0 %v284
    %v286 = vpop.xlane.xlu0 %285
    %v287 = vrot.slane %v286, 4
    %v288 = vadd.f32 %v286, %v287
    %v289 = vrot.slane %v288, 2
    %v290 = vadd.f32 %v288, %v289
    %v291 = vrot.slane %v290, 1
    %v292 = vadd.f32 %v290, %v291
    %s293 = vtos %v292
    %s294 = sadd.f32 %s282, %s293
    %s295 = scalar_lea.smem [#allocation4], 1
    %296 = sst [smem:[%s295]] %s294
    // Predicated region
    $region38: #{tpu_custom_call.1} parent=1 // pred_check
      %p297 = pneg %p73
    $region39: #{tpu_custom_call.1} parent=1 // pred_check_branch
      %299 = sbr.rel (%p297) target = $region41
    $region40: #{tpu_custom_call.1} parent=1 // pred_region
      %s300 = sld [smem:[#allocation4]]
      %s301 = smul.f32 %s300, 0.125
      %s302 = scalar_lea.smem [#allocation13], 0
      %303 = sst [smem:[%s302]] %s301
      %s304 = sld [smem:[#allocation4 + $0x1]]
      %s305 = smul.f32 %s304, 0.125
      %s306 = scalar_lea.smem [#allocation13], 1
      %307 = sst [smem:[%s306]] %s305
    $region41: #{tpu_custom_call.1} parent=1 // pred_fallthru
      _
    // Predicated region
    $region42: #{tpu_custom_call.1} parent=1 // pred_check
      _
    $region43: #{tpu_custom_call.1} parent=1 // pred_check_branch
      %309 = sbr.rel (0) target = $region45
    $region44: #{tpu_custom_call.1} parent=1 // pred_region
      %311 = vsyncadd [#allocation7], 0
      %s313 = sshll.u32 %s4, 4
      %s314 = int_to_ptr.hbm [resolvable:$true] %s313
      %316 = dma.smem_to_hbm [#allocation13], 16, %s314, [#allocation7]
    $region45: #{tpu_custom_call.1} parent=1 // pred_fallthru
      _
    // Predicated region
    $region46: #{tpu_custom_call.1} parent=1 // pred_check
      _
    $region47: #{tpu_custom_call.1} parent=1 // pred_check_branch
      %318 = sbr.rel (0) target = $region49
    $region48: #{tpu_custom_call.1} parent=1 // pred_region
      %320 = dma.done [#allocation7], 16
    $region49: #{tpu_custom_call.1} parent=1 // pred_fallthru
      _
    %321 = sfence
    %322 = vsyncpa [#allocation6], 1
    %323 = vsyncpa [#allocation9], 1
    %324 = vsyncpa [#allocation12], 1
    %325 = vsyncpa [#allocation7], 1

</llo_original>
